<compile_context>
chip_gen: v7x
topology: tpu7x:2x2x1
jax: 0.10.0
libtpu: 0.0.40
codegen_flags: <defaults>
</compile_context>

<pallas_src>
import functools

import jax
import jax.numpy as jnp
from jax.experimental import pallas as pl
from jax.experimental.pallas import tpu as pltpu


def _round_up(x, m):
    return (x + m - 1) // m * m


# ---------------------------------------------------------------------------
# Pallas kernels
# ---------------------------------------------------------------------------
def _mlp_kernel(xt_ref, w1t_ref, b1_ref, w2_ref, b2_ref, pred_ref):
    # xt: [F, TD] (docs on the lane axis), w1t: [H, F], b1/w2: [H, 1],
    # b2: SMEM (1, 1)  ->  pred: [1, TD] (lane-dense row).
    h = jnp.dot(w1t_ref[...], xt_ref[...],
                preferred_element_type=jnp.float32)          # MXU: [H, TD]
    h = jnp.maximum(h + b1_ref[...], 0.0)                    # VPU relu
    # H -> 1 contraction on VPU + sublane reduce (XLU); avoids a width-1 MXU
    # matmul and produces a lane-dense (1, TD) row directly.
    p = jnp.sum(h * w2_ref[...], axis=0, keepdims=True)      # [1, TD]
    pred_ref[...] = p + b2_ref[0, 0]


def _pairwise_loss_kernel(cols_ref, rows_ref, out_ref, *, sigma):
    # cols_ref: [TM, 5]  -> pair index i (pred, label, 0.5*n_gain, disc, valid)
    # rows_ref: [5, TN]  -> pair index j (same channels)
    # out_ref : [1, 1, 128] accumulator block, resident across the j axis.
    j = pl.program_id(1)

    @pl.when(j == 0)
    def _init():
        out_ref[...] = jnp.zeros_like(out_ref)

    pred_i = cols_ref[:, 0:1]
    lbl_i  = cols_ref[:, 1:2]
    g_i    = cols_ref[:, 2:3]
    d_i    = cols_ref[:, 3:4]
    v_i    = cols_ref[:, 4:5]

    pred_j = rows_ref[0:1, :]
    lbl_j  = rows_ref[1:2, :]
    g_j    = rows_ref[2:3, :]
    d_j    = rows_ref[3:4, :]
    v_j    = rows_ref[4:5, :]

    s_ij = pred_i - pred_j                              # [TM, TN]
    Sij = jnp.clip(lbl_i - lbl_j, -1.0, 1.0)
    loss_1st = (0.5 * sigma) * s_ij * (1.0 - Sij)
    # Numerically stable softplus(-sigma*s_ij): exp argument is always <= 0.
    z = sigma * s_ij
    loss_2nd = jnp.maximum(-z, 0.0) + jnp.log(1.0 + jnp.exp(-jnp.abs(z)))
    loss_12 = loss_1st + loss_2nd

    # |delta gain| (0.5 pre-folded) * |delta discount| * padding mask.
    weight = jnp.abs(g_i - g_j) * jnp.abs(d_i - d_j) * (v_i * v_j)

    out_ref[...] += jnp.sum(loss_12 * weight)

    # Final value is already the row-tile total; writeback happens when the
    # output block is evicted after the last j step (no explicit finalize).


# ---------------------------------------------------------------------------
# Wrappers
# ---------------------------------------------------------------------------
def mlp_forward(x, w1, b1, w2, b2, *, tile_docs=256):
    """Scores N documents: x [N, F] -> pred [N] (f32)."""
    N, F = x.shape
    H = w1.shape[-1]

    n_pad = _round_up(N, 128)
    td = min(tile_docs, n_pad)
    n_pad = _round_up(n_pad, td)

    xt = jnp.zeros((F, n_pad), jnp.float32).at[:, :N].set(
        x.astype(jnp.float32).T)
    w1t = w1.astype(jnp.float32).T.reshape(H, F)
    b1c = b1.astype(jnp.float32).reshape(H, 1)
    w2c = w2.astype(jnp.float32).reshape(H, 1)
    b2s = jnp.asarray(b2, jnp.float32).reshape(1, 1)

    pred_row = pl.pallas_call(
        _mlp_kernel,
        out_shape=jax.ShapeDtypeStruct((1, n_pad), jnp.float32),
        grid=(n_pad // td,),
        in_specs=[
            pl.BlockSpec((F, td), lambda d: (0, d)),                 # x^T tile
            pl.BlockSpec((H, F), lambda d: (0, 0)),                  # w1^T
            pl.BlockSpec((H, 1), lambda d: (0, 0)),                  # b1 column
            pl.BlockSpec((H, 1), lambda d: (0, 0)),                  # w2 column
            pl.BlockSpec(memory_space=pltpu.MemorySpace.SMEM),       # b2 scalar
        ],
        out_specs=pl.BlockSpec((1, td), lambda d: (0, d)),
        compiler_params=pltpu.CompilerParams(
            dimension_semantics=("parallel",)),
    )(xt, w1t, b1c, w2c, b2s)
    return pred_row[0, :N]


def pairwise_loss(pred, labels, n_gains, discounts, *, sigma=1.0, tile=512):
    """Tiled N x N pairwise LambdaRank loss. Inputs are length-N vectors."""
    N = pred.shape[0]

    n_pad = _round_up(N, 128)
    t = min(tile, n_pad)              # tile is a multiple of 128
    n_pad = _round_up(n_pad, t)
    R = n_pad // t                    # row tiles (parallel)
    C = n_pad // t                    # col tiles (reduction, arbitrary)

    def pad(v):
        return jnp.zeros((n_pad,), jnp.float32).at[:N].set(
            v.astype(jnp.float32))

    valid = jnp.zeros((n_pad,), jnp.float32).at[:N].set(1.0)
    # Fold the trailing *0.5 of the torch loss into the gain channel.
    rows = jnp.stack([pad(pred), pad(labels), pad(0.5 * n_gains),
                      pad(discounts), valid])                 # [5, n_pad]
    cols = rows.T                                             # [n_pad, 5]

    partials = pl.pallas_call(
        functools.partial(_pairwise_loss_kernel, sigma=float(sigma)),
        out_shape=jax.ShapeDtypeStruct((R, 1, 128), jnp.float32),
        grid=(R, C),
        in_specs=[
            pl.BlockSpec((t, 5), lambda i, j: (i, 0)),   # column side (idx i)
            pl.BlockSpec((5, t), lambda i, j: (0, j)),   # row side    (idx j)
        ],
        out_specs=pl.BlockSpec((1, 1, 128), lambda i, j: (i, 0, 0)),
        compiler_params=pltpu.CompilerParams(
            dimension_semantics=("parallel", "arbitrary"),
            vmem_limit_bytes=48 * 1024 * 1024,
        ),
    )(cols, rows)
    # Every lane of a row holds the same row-tile total; sum row-tile totals.
    return jnp.sum(partials[:, 0, 0])


def idcg_std(labels):
    # Ideal DCG: labels sorted descending, gains 2^l - 1, discount 1/log2(r+2).
    sorted_lbl = jnp.sort(labels)[::-1]
    gains = jnp.power(2.0, sorted_lbl) - 1.0
    ranks = jnp.arange(labels.shape[0], dtype=jnp.float32)
    discounts = 1.0 / jnp.log2(ranks + 2.0)
    return jnp.sum(gains * discounts)


def lambdarank_forward(params, batch_rankings, batch_stds_labels, sigma=1.0):
    w1, b1, w2, b2 = params
    pred = mlp_forward(batch_rankings, w1, b1, w2, b2)      # [N] f32
    N = pred.shape[0]

    # delta-nDCG glue (sorting stays in JAX; see TODO(synk) at top of file).
    idcg = idcg_std(batch_stds_labels)
    argsort = jnp.argsort(-pred)                            # descending by pred
    pred_ar_sorted = batch_stds_labels[argsort]
    gains = jnp.power(2.0, pred_ar_sorted) - 1.0
    safe_idcg = jnp.where(idcg == 0.0, 1.0, idcg)
    n_gains = jnp.where(idcg == 0.0, gains, gains / safe_idcg)

    ranks = jnp.arange(N, dtype=jnp.float32)
    discounts = 1.0 / jnp.log2(ranks + 2.0)

    return pairwise_loss(pred, batch_stds_labels, n_gains, discounts,
                         sigma=sigma)


# ---------------------------------------------------------------------------
# Main
# ---------------------------------------------------------------------------
if __name__ == "__main__":
    N, F, H = 8, 16, 32                                     # docs, features, hidden
    key = jax.random.PRNGKey(0)
    k1, k2, k3, k4, kx, kl = jax.random.split(key, 6)

    # Deterministic synthetic params for Sequential(Linear(F,H), ReLU, Linear(H,1))
    w1 = 0.1 * jax.random.normal(k1, (F, H), jnp.float32)
    b1 = 0.1 * jax.random.normal(k2, (H,), jnp.float32)
    w2 = 0.1 * jax.random.normal(k3, (H, 1), jnp.float32)
    b2 = 0.1 * jax.random.normal(k4, (1,), jnp.float32)

    batch_rankings = jax.random.normal(kx, (N, F), jnp.float32)
    batch_stds_labels = jax.random.randint(kl, (N,), 0, 5).astype(jnp.float32)

    loss = lambdarank_forward((w1, b1, w2, b2), batch_rankings,
                              batch_stds_labels, sigma=1.0)
    jax.block_until_ready(loss)
    print("KERNEL_OK")
</pallas_src>

<mosaic_0001>
module attributes {stable_mosaic.version = 11 : i64} {
  func.func @_mlp_kernel(%arg0: i32, %arg1: memref<16x128xf32, #tpu.memory_space<vmem>>, %arg2: memref<32x16xf32, #tpu.memory_space<vmem>>, %arg3: memref<32x1xf32, #tpu.memory_space<vmem>>, %arg4: memref<32x1xf32, #tpu.memory_space<vmem>>, %arg5: memref<1x1xf32, #tpu.memory_space<smem>>, %arg6: memref<1x128xf32, #tpu.memory_space<vmem>>) attributes {dimension_semantics = [#tpu.dimension_semantics<parallel>], iteration_bounds = array<i64: 1>, scalar_prefetch = 0 : i64, scratch_operands = 0 : i64, tpu.core_type = #tpu.core_type<tc>, window_params = [{transform_indices = @transform_0, window_bounds = array<i64: 16, 128>}, {pipeline_mode = #tpu.pipeline_mode<synchronous>, transform_indices = @transform_1, window_bounds = array<i64: 32, 16>}, {pipeline_mode = #tpu.pipeline_mode<synchronous>, transform_indices = @transform_2, window_bounds = array<i64: 32, 1>}, {pipeline_mode = #tpu.pipeline_mode<synchronous>, transform_indices = @transform_3, window_bounds = array<i64: 32, 1>}, {transform_indices = @transform_4, window_bounds = array<i64: 1, 1>}, {transform_indices = @transform_5, window_bounds = array<i64: 1, 128>}]} {
    %c0 = arith.constant 0 : index
    %c0_0 = arith.constant 0 : index
    %0 = vector.load %arg2[%c0, %c0_0] : memref<32x16xf32, #tpu.memory_space<vmem>>, vector<32x16xf32>
    %c0_1 = arith.constant 0 : index
    %c0_2 = arith.constant 0 : index
    %1 = vector.load %arg1[%c0_1, %c0_2] : memref<16x128xf32, #tpu.memory_space<vmem>>, vector<16x128xf32>
    %cst = arith.constant dense<0.000000e+00> : vector<32x128xf32>
    %2 = tpu.matmul %0, %1, %cst {dimension_numbers = #tpu.dot_dimension_numbers<[1], [0], [0], [1], [0, 0, 1, 1], [], []>} : vector<32x16xf32>, vector<16x128xf32>, vector<32x128xf32> -> vector<32x128xf32>
    %c0_3 = arith.constant 0 : index
    %c0_4 = arith.constant 0 : index
    %3 = vector.load %arg3[%c0_3, %c0_4] : memref<32x1xf32, #tpu.memory_space<vmem>>, vector<32x1xf32>
    %4 = vector.broadcast %3 : vector<32x1xf32> to vector<32x128xf32>
    %5 = arith.addf %2, %4 : vector<32x128xf32>
    %cst_5 = arith.constant 0.000000e+00 : f32
    %6 = vector.broadcast %cst_5 : f32 to vector<32x128xf32>
    %7 = arith.maximumf %5, %6 : vector<32x128xf32>
    %c0_6 = arith.constant 0 : index
    %c0_7 = arith.constant 0 : index
    %8 = vector.load %arg4[%c0_6, %c0_7] : memref<32x1xf32, #tpu.memory_space<vmem>>, vector<32x1xf32>
    %9 = vector.broadcast %8 : vector<32x1xf32> to vector<32x128xf32>
    %10 = arith.mulf %7, %9 : vector<32x128xf32>
    %cst_8 = arith.constant dense<0.000000e+00> : vector<128xf32>
    %11 = vector.multi_reduction <add>, %10, %cst_8 [0] : vector<32x128xf32> to vector<128xf32>
    %12 = vector.shape_cast %11 : vector<128xf32> to vector<1x128xf32>
    %c0_9 = arith.constant 0 : index
    %c0_10 = arith.constant 0 : index
    %13 = memref.load %arg5[%c0_9, %c0_10] : memref<1x1xf32, #tpu.memory_space<smem>>
    %14 = vector.broadcast %13 : f32 to vector<1x128xf32>
    %15 = arith.addf %12, %14 : vector<1x128xf32>
    %c0_11 = arith.constant 0 : index
    %c0_12 = arith.constant 0 : index
    %16 = vector.load %arg6[%c0_11, %c0_12] : memref<1x128xf32, #tpu.memory_space<vmem>>, vector<1x128xf32>
    tpu.vector_store %arg6[%c0_11, %c0_12], %15 {strides = array<i32>} : memref<1x128xf32, #tpu.memory_space<vmem>>, vector<1x128xf32>,
    return
  }
  func.func @transform_0(%arg0: i32) -> (i32, i32) {
    %c0_i32 = arith.constant 0 : i32
    %c0_i32_0 = arith.constant 0 : i32
    return %c0_i32, %arg0 : i32, i32
  }
  func.func @transform_1(%arg0: i32) -> (i32, i32) {
    %c0_i32 = arith.constant 0 : i32
    %c0_i32_0 = arith.constant 0 : i32
    %c0_i32_1 = arith.constant 0 : i32
    return %c0_i32, %c0_i32_0 : i32, i32
  }
  func.func @transform_2(%arg0: i32) -> (i32, i32) {
    %c0_i32 = arith.constant 0 : i32
    %c0_i32_0 = arith.constant 0 : i32
    %c0_i32_1 = arith.constant 0 : i32
    return %c0_i32, %c0_i32_0 : i32, i32
  }
  func.func @transform_3(%arg0: i32) -> (i32, i32) {
    %c0_i32 = arith.constant 0 : i32
    %c0_i32_0 = arith.constant 0 : i32
    %c0_i32_1 = arith.constant 0 : i32
    return %c0_i32, %c0_i32_0 : i32, i32
  }
  func.func @transform_4(%arg0: i32) -> (i32, i32) {
    %c0_i32 = arith.constant 0 : i32
    %c0_i32_0 = arith.constant 0 : i32
    %c0_i32_1 = arith.constant 0 : i32
    return %c0_i32, %c0_i32_0 : i32, i32
  }
  func.func @transform_5(%arg0: i32) -> (i32, i32) {
    %c0_i32 = arith.constant 0 : i32
    %c0_i32_0 = arith.constant 0 : i32
    return %c0_i32, %arg0 : i32, i32
  }
}

</mosaic_0001>

<llo_original>
// kernel: tpu_custom_call.1
$region0: #{tpu_custom_call.1}
  #allocation0 [shape = 'u32[]', space=smem, size = 0x4, offset = 0x4, fixed_abs, tag = 'smem constant byte address 0x4 - core index']
  #allocation1 [shape = 'u32[144,128]{1,0:T(1,128)}', space=vmem, size = 0x12000, scoped, tag = 'internal scratch']
  #allocation2 [shape = 'f32[1,1]{1,0:T(1,128)S(6)}', space=smem, size = 0x200, scoped, tag = 'scoped memory for tpu_custom_call.1']
  %s0 = inlined_call_operand.vmem [shape: f32[16,128], index: 0, kind: input, shape index: {}]
  %s1 = inlined_call_operand.vmem [shape: f32[32,16], index: 1, kind: input, shape index: {}]
  %s2 = inlined_call_operand.vmem [shape: f32[32,1], index: 2, kind: input, shape index: {}]
  %s3 = inlined_call_operand.vmem [shape: f32[32,1], index: 3, kind: input, shape index: {}]
  %s4 = inlined_call_operand.<no memory space> [shape: f32[1,1], index: 4, kind: input, shape index: {}]
  %s5 = inlined_call_operand.hbm [shape: f32[1,128], index: 5, kind: output, shape index: {}]
  %s6 = sld [smem:[#allocation0]]
  $region30: #{tpu_custom_call.1} parent=0
    _
  %s8 = ssub.s32 1, %s6
  %s9 = scalar_select 0, %s8, %s6
  %10 = sst [smem:[#allocation2]] %s4
  $region1: #{tpu_custom_call.1} parent=0
    #allocation3 [shape = 'u8[512]{0}', space=vmem, size = 0x400, scoped, tag = 'output window, operand 0, single buffered']
    #allocation4 [shape = 's32[1]{0}', space=sflag, size = 0x4, scoped, tag = 'scoped memory for tpu_custom_call.1']
    %11 = vsyncpa [#allocation4], 0
    // Predicated region
    $region2: #{tpu_custom_call.1} parent=1 // pred_check
      _
    $region3: #{tpu_custom_call.1} parent=1 // pred_check_branch
      %13 = sbr.rel (0) target = $region5
    $region4: #{tpu_custom_call.1} parent=1 // pred_region
      _
    $region5: #{tpu_custom_call.1} parent=1 // pred_fallthru
      _
    // Predicated region
    $region6: #{tpu_custom_call.1} parent=1 // pred_check
      _
    $region7: #{tpu_custom_call.1} parent=1 // pred_check_branch
      %15 = sbr.rel (0) target = $region9
    $region8: #{tpu_custom_call.1} parent=1 // pred_region
      _
    $region9: #{tpu_custom_call.1} parent=1 // pred_fallthru
      _
    // Predicated region
    $region10: #{tpu_custom_call.1} parent=1 // pred_check
      _
    $region11: #{tpu_custom_call.1} parent=1 // pred_check_branch
      %17 = sbr.rel (0) target = $region13
    $region12: #{tpu_custom_call.1} parent=1 // pred_region
      _
    $region13: #{tpu_custom_call.1} parent=1 // pred_fallthru
      _
    // Predicated region
    $region14: #{tpu_custom_call.1} parent=1 // pred_check
      _
    $region15: #{tpu_custom_call.1} parent=1 // pred_check_branch
      %19 = sbr.rel (0) target = $region17
    $region16: #{tpu_custom_call.1} parent=1 // pred_region
      _
    $region17: #{tpu_custom_call.1} parent=1 // pred_fallthru
      _
    // Predicated region
    $region18: #{tpu_custom_call.1} parent=1 // pred_check
      _
    $region19: #{tpu_custom_call.1} parent=1 // pred_check_branch
      %21 = sbr.rel (0) target = $region21
    $region20: #{tpu_custom_call.1} parent=1 // pred_region
      _
    $region21: #{tpu_custom_call.1} parent=1 // pred_fallthru
      _
    %v22 = vld [vmem:[%s1] sm:$0xff]
    %v23 = vld [vmem:[%s1 + $0x8] sm:$0xff]
    %v24 = vld [vmem:[%s1 + $0x10] sm:$0xff]
    %v25 = vld [vmem:[%s1 + $0x18] sm:$0xff]
    %v26 = vld [vmem:[%s0] sm:$0xff]
    %v27 = vld [vmem:[%s0 + $0x8] sm:$0xff]
    %v28 = vld [vmem:[%s2] sm:$0xff]
    %v29 = vld [vmem:[%s2 + $0x8] sm:$0xff]
    %v30 = vld [vmem:[%s2 + $0x10] sm:$0xff]
    %v31 = vld [vmem:[%s2 + $0x18] sm:$0xff]
    %33 = vset.pattern.permute.xlu0 0
    %34 = vperm.xlu0 %33, %v28
    %v35 = vpop.permute.xlu0 %34
    %38 = vset.pattern.permute.xlu0 0
    %39 = vperm.xlu0 %38, %v29
    %v40 = vpop.permute.xlu0 %39
    %43 = vset.pattern.permute.xlu0 0
    %44 = vperm.xlu0 %43, %v30
    %v45 = vpop.permute.xlu0 %44
    %48 = vset.pattern.permute.xlu0 0
    %49 = vperm.xlu0 %48, %v31
    %v50 = vpop.permute.xlu0 %49
    %vm52 = vcmask 130048
    %v54 = vsel %vm52, %v22, 0
    %v57 = vsel %vm52, %v23, 0
    %v60 = vsel %vm52, %v24, 0
    %v63 = vsel %vm52, %v25, 0
    %65 = vmatprep.subr.mxu0 0.0
    %66 = vmatpush1.msra.mxu0 %v26
    %67 = vmatprep.subr.mxu0 0.0
    %68 = vmatpush1.msra.mxu0 %v27
    %69 = vmatprep.subr.mxu0 0.0
    %70 = vmatpush1.msra.mxu0 0.0
    %71 = vmatprep.subr.mxu0 0.0
    %72 = vmatpush1.msra.mxu0 0.0
    %73 = vmatprep.subr.mxu0 0.0
    %74 = vmatpush1.msra.mxu0 0.0
    %75 = vmatprep.subr.mxu0 0.0
    %76 = vmatpush1.msra.mxu0 0.0
    %77 = vmatprep.subr.mxu0 0.0
    %78 = vmatpush1.msra.mxu0 0.0
    %79 = vmatprep.subr.mxu0 0.0
    %80 = vmatpush1.msra.mxu0 0.0
    %81 = vmatprep.subr.mxu0 0.0
    %82 = vmatpush1.msra.mxu0 0.0
    %83 = vmatprep.subr.mxu0 0.0
    %84 = vmatpush1.msra.mxu0 0.0
    %85 = vmatprep.subr.mxu0 0.0
    %86 = vmatpush1.msra.mxu0 0.0
    %87 = vmatprep.subr.mxu0 0.0
    %88 = vmatpush1.msra.mxu0 0.0
    %89 = vmatprep.subr.mxu0 0.0
    %90 = vmatpush1.msra.mxu0 0.0
    %91 = vmatprep.subr.mxu0 0.0
    %92 = vmatpush1.msra.mxu0 0.0
    %93 = vmatprep.subr.mxu0 0.0
    %94 = vmatpush1.msra.mxu0 0.0
    %95 = vmatprep.subr.mxu0 0.0
    %96 = vmatpush1.msra.mxu0 0.0
    %97 = vmatprep.subr.mxu0 0.0
    %98 = vmatpush1.msra.mxu0 0.0
    %99 = vmatprep.subr.mxu0 0.0
    %100 = vmatpush1.msra.mxu0 0.0
    %101 = vmatprep.subr.mxu0 0.0
    %102 = vmatpush1.msra.mxu0 0.0
    %103 = vmatprep.subr.mxu0 0.0
    %104 = vmatpush1.msra.mxu0 0.0
    %105 = vmatprep.subr.mxu0 0.0
    %106 = vmatpush1.msra.mxu0 0.0
    %107 = vmatprep.subr.mxu0 0.0
    %108 = vmatpush1.msra.mxu0 0.0
    %109 = vmatprep.subr.mxu0 0.0
    %110 = vmatpush1.msra.mxu0 0.0
    %111 = vmatprep.subr.mxu0 0.0
    %112 = vmatpush1.msra.mxu0 0.0
    %113 = vmatprep.subr.mxu0 0.0
    %114 = vmatpush1.msra.mxu0 0.0
    %115 = vmatprep.subr.mxu0 0.0
    %116 = vmatpush1.msra.mxu0 0.0
    %117 = vmatprep.subr.mxu0 0.0
    %118 = vmatpush1.msra.mxu0 0.0
    %119 = vmatprep.subr.mxu0 0.0
    %120 = vmatpush1.msra.mxu0 0.0
    %121 = vmatprep.subr.mxu0 0.0
    %122 = vmatpush1.msra.mxu0 0.0
    %123 = vmatprep.subr.mxu0 0.0
    %124 = vmatpush1.msra.mxu0 0.0
    %125 = vmatprep.subr.mxu0 0.0
    %126 = vmatpush1.msra.mxu0 0.0
    %127 = vmatprep.subr.mxu0 0.0
    %128 = vmatpush1.msra.mxu0 0.0
    %129 = vmatprep.mubr.f32.mxu0 0.0
    %130 = vmatmul.mubr.f32.gmra.mrb[0].mxu0 %v54
    %v131 = vpop.f32.mrb[0].mxu0
    %v132 = vadd.f32 %v35, %v131
    %v133 = vpop.f32.mrb[0].mxu0
    %134 = vmatprep.mubr.f32.mxu0 0.0
    %135 = vmatmul.mubr.f32.gmra.mrb[0].mxu0 %v57
    %v136 = vpop.f32.mrb[0].mxu0
    %v137 = vadd.f32 %v40, %v136
    %v138 = vpop.f32.mrb[0].mxu0
    %139 = vmatprep.mubr.f32.mxu0 0.0
    %140 = vmatmul.mubr.f32.gmra.mrb[0].mxu0 %v60
    %v141 = vpop.f32.mrb[0].mxu0
    %v142 = vadd.f32 %v45, %v141
    %v143 = vpop.f32.mrb[0].mxu0
    %144 = vmatprep.mubr.f32.mxu0 0.0
    %145 = vmatmul.mubr.f32.gmra.mrb[0].mxu0 %v63
    %v146 = vpop.f32.mrb[0].mxu0
    %v147 = vadd.f32 %v50, %v146
    %v148 = vpop.f32.mrb[0].mxu0
    %149 = vdwg.mxu0
    %v150 = vmax.f32 %v132, 0.0
    %v151 = vmax.f32 %v137, 0.0
    %v152 = vmax.f32 %v142, 0.0
    %v153 = vmax.f32 %v147, 0.0
    %v154 = vld [vmem:[%s3] sm:$0xff]
    %v155 = vld [vmem:[%s3 + $0x8] sm:$0xff]
    %v156 = vld [vmem:[%s3 + $0x10] sm:$0xff]
    %v157 = vld [vmem:[%s3 + $0x18] sm:$0xff]
    %159 = vset.pattern.permute.xlu0 0
    %160 = vperm.xlu0 %159, %v154
    %v161 = vpop.permute.xlu0 %160
    %164 = vset.pattern.permute.xlu0 0
    %165 = vperm.xlu0 %164, %v155
    %v166 = vpop.permute.xlu0 %165
    %169 = vset.pattern.permute.xlu0 0
    %170 = vperm.xlu0 %169, %v156
    %v171 = vpop.permute.xlu0 %170
    %174 = vset.pattern.permute.xlu0 0
    %175 = vperm.xlu0 %174, %v157
    %v176 = vpop.permute.xlu0 %175
    %v178 = vmul.f32 %v150, %v161
    %v179 = vmul.f32 %v151, %v166
    %v180 = vmul.f32 %v152, %v171
    %v181 = vmul.f32 %v153, %v176
    %v182 = vadd.f32 %v178, %v179
    %v183 = vadd.f32 %v182, %v180
    %v184 = vadd.f32 %v183, %v181
    %v185 = vrot.slane %v184, 4
    %v186 = vadd.f32 %v184, %v185
    %v187 = vrot.slane %v186, 2
    %v188 = vadd.f32 %v186, %v187
    %v189 = vrot.slane %v188, 1
    %v190 = vadd.f32 %v188, %v189
    %s191 = sld [smem:[#allocation2]]
    %v192 = vstv %s191
    %v193 = vadd.f32 %v190, %v192
    %194 = vst [vmem:[#allocation3] sm:$0x1] %v193
    // Predicated region
    $region22: #{tpu_custom_call.1} parent=1 // pred_check
      _
    $region23: #{tpu_custom_call.1} parent=1 // pred_check_branch
      %196 = sbr.rel (0) target = $region25
    $region24: #{tpu_custom_call.1} parent=1 // pred_region
      %s198 = ssub.s32 16, 16
      %199 = vsyncadd [#allocation4], %s198
      %s201 = sshll.u32 [#allocation3], 4
      %s202 = int_to_ptr.vmem [resolvable:$true] %s201
      %204 = dma.vmem_to_hbm [thread:$0]  %s202, 16, %s5, [#allocation4]
    $region25: #{tpu_custom_call.1} parent=1 // pred_fallthru
      _
    // Predicated region
    $region26: #{tpu_custom_call.1} parent=1 // pred_check
      _
    $region27: #{tpu_custom_call.1} parent=1 // pred_check_branch
      %206 = sbr.rel (0) target = $region29
    $region28: #{tpu_custom_call.1} parent=1 // pred_region
      %207 = dma.done [#allocation4], 16
    $region29: #{tpu_custom_call.1} parent=1 // pred_fallthru
      _
    %208 = vsyncpa [#allocation4], 1

</llo_original>
